<compile_context>
chip_gen: v7x
topology: tpu7x:2x2x1
jax: 0.10.0
libtpu: 0.0.40
codegen_flags: <defaults>
</compile_context>

<pallas_src>
import math
from functools import partial

import jax
import jax.numpy as jnp
from jax.experimental import pallas as pl
from jax.experimental.pallas import tpu as pltpu


# ----------------------------------------------------------------------------
# small helpers
# ----------------------------------------------------------------------------
def _round_up(x, m):
    return ((x + m - 1) // m) * m


def _pad2(r, c):
    # (8,128)-padded element count of a 2D VMEM tile (layout-aware estimate).
    return _round_up(max(int(r), 1), 8) * _round_up(max(int(c), 1), 128)


def _vmem_limit_bytes(nbytes):
    # Generation-aware cap: ~3/4 of physical VMEM (v5e/v6e: 128 MiB -> 96 MiB,
    # v7x: 64 MiB -> 48 MiB); floor of 16 MiB.
    try:
        phys = int(pltpu.get_tpu_info().vmem_capacity_bytes)
    except Exception:
        phys = 64 << 20
    cap = max(32 << 20, (phys * 3) // 4)
    return int(min(max(nbytes + (1 << 20), 16 << 20), cap))


# ----------------------------------------------------------------------------
# Pallas kernel 1: LayerNorm over the channel dim of a (rows, C) slab
# ----------------------------------------------------------------------------
def _layernorm_kernel_full(x_ref, w_ref, b_ref, o_ref, *, eps):
    # C >= 128 path: plain row-wise LayerNorm.
    x = x_ref[...].astype(jnp.float32)
    mean = jnp.mean(x, axis=-1, keepdims=True)
    xc = x - mean
    var = jnp.mean(xc * xc, axis=-1, keepdims=True)        # biased (torch LN)
    y = xc * jax.lax.rsqrt(var + eps)
    y = y * w_ref[...].astype(jnp.float32) + b_ref[...].astype(jnp.float32)
    o_ref[...] = y.astype(o_ref.dtype)


def _layernorm_kernel_packed(x_ref, w_ref, b_ref, avg_ref, o_ref, *, eps):
    # C < 128 path: `groups` tokens packed side-by-side on the lane axis.
    # Per-group mean / E[x^2] via one MXU matmul against a constant
    # block-diagonal averaging matrix -> everything stays (TM, 128) lane-dense.
    x = x_ref[...].astype(jnp.float32)
    avg = avg_ref[...].astype(jnp.float32)
    mean = jnp.dot(x, avg, preferred_element_type=jnp.float32)
    ex2 = jnp.dot(x * x, avg, preferred_element_type=jnp.float32)
    var = ex2 - mean * mean
    y = (x - mean) * jax.lax.rsqrt(var + eps)
    y = y * w_ref[...].astype(jnp.float32) + b_ref[...].astype(jnp.float32)
    o_ref[...] = y.astype(o_ref.dtype)


def layer_norm(x2d, weight, bias, *, eps=1e-5, target_rows=2048,
               max_tile_bytes=8 << 20):
    """LayerNorm over the last axis of (rows, C); Pallas TPU kernel."""
    n, c = x2d.shape
    g = 128 // c if (c < 128 and 128 % c == 0) else 1
    lanes = g * c
    rows_packed = pl.cdiv(n, g)
    itm = x2d.dtype.itemsize
    row_bytes = lanes * itm
    tm = min(target_rows, max(8, (max_tile_bytes // row_bytes) // 8 * 8))
    tm = min(tm, _round_up(rows_packed, 8))
    rows_pad = _round_up(rows_packed, tm)
    n_pad = rows_pad * g
    if n_pad != n:
        x2d = jnp.pad(x2d, ((0, n_pad - n), (0, 0)))        # zero tail, sliced off
    x_packed = x2d.reshape(rows_pad, lanes)

    vmem = (4 * _pad2(tm, lanes) * itm
            + 2 * (2 * _pad2(1, lanes) + _pad2(lanes, lanes)) * 4)
    cparams = pltpu.CompilerParams(
        dimension_semantics=("parallel",),
        vmem_limit_bytes=_vmem_limit_bytes(vmem))

    if g == 1:
        w2 = weight.reshape(1, c).astype(jnp.float32)
        b2 = bias.reshape(1, c).astype(jnp.float32)
        out = pl.pallas_call(
            partial(_layernorm_kernel_full, eps=eps),
            out_shape=jax.ShapeDtypeStruct((rows_pad, lanes), x2d.dtype),
            grid=(rows_pad // tm,),
            in_specs=[pl.BlockSpec((tm, lanes), lambda i: (i, 0)),
                      pl.BlockSpec((1, c), lambda i: (0, 0)),
                      pl.BlockSpec((1, c), lambda i: (0, 0))],
            out_specs=pl.BlockSpec((tm, lanes), lambda i: (i, 0)),
            compiler_params=cparams,
        )(x_packed, w2, b2)
    else:
        w_t = jnp.tile(weight.astype(jnp.float32), g).reshape(1, lanes)
        b_t = jnp.tile(bias.astype(jnp.float32), g).reshape(1, lanes)
        avg = jnp.kron(jnp.eye(g, dtype=jnp.float32),
                       jnp.full((c, c), 1.0 / c, jnp.float32))
        out = pl.pallas_call(
            partial(_layernorm_kernel_packed, eps=eps),
            out_shape=jax.ShapeDtypeStruct((rows_pad, lanes), x2d.dtype),
            grid=(rows_pad // tm,),
            in_specs=[pl.BlockSpec((tm, lanes), lambda i: (i, 0)),
                      pl.BlockSpec((1, lanes), lambda i: (0, 0)),
                      pl.BlockSpec((1, lanes), lambda i: (0, 0)),
                      pl.BlockSpec((lanes, lanes), lambda i: (0, 0))],
            out_specs=pl.BlockSpec((tm, lanes), lambda i: (i, 0)),
            compiler_params=cparams,
        )(x_packed, w_t, b_t, avg)
    return out.reshape(rows_pad * g, c)[:n]


# ----------------------------------------------------------------------------
# Pallas kernel 2: row-tiled Linear (x @ W [+ b]), bf16 MXU, f32 accumulation
# ----------------------------------------------------------------------------
def _linear_bias_kernel(x_ref, w_ref, b_ref, o_ref, *, mxu_dtype):
    y = jnp.dot(x_ref[...].astype(mxu_dtype), w_ref[...].astype(mxu_dtype),
                preferred_element_type=jnp.float32)
    o_ref[...] = (y + b_ref[...].astype(jnp.float32)).astype(o_ref.dtype)


def _linear_nobias_kernel(x_ref, w_ref, o_ref, *, mxu_dtype):
    y = jnp.dot(x_ref[...].astype(mxu_dtype), w_ref[...].astype(mxu_dtype),
                preferred_element_type=jnp.float32)
    o_ref[...] = y.astype(o_ref.dtype)


def linear(x2d, w, b=None, *, target_rows=1024, max_tile_bytes=8 << 20,
           mxu_dtype=jnp.bfloat16, lane_multiple=128):
    """Row-tiled (x @ w [+ b]) Pallas kernel: resident bf16 weights, 128-padded
    output columns (lane-dense unmasked stores), rows padded to the tile size."""
    m, k = x2d.shape
    kw, nout = w.shape
    assert k == kw
    n_pad = _round_up(nout, lane_multiple)
    wp = w.astype(mxu_dtype)
    if n_pad != nout:
        wp = jnp.pad(wp, ((0, 0), (0, n_pad - nout)))

    itm = x2d.dtype.itemsize
    row_bytes = k * itm + n_pad * 4
    tm = min(target_rows, max(8, (max_tile_bytes // row_bytes) // 8 * 8))
    tm = min(tm, _round_up(m, 8))
    m_pad = _round_up(m, tm)
    if m_pad != m:
        x2d = jnp.pad(x2d, ((0, m_pad - m), (0, 0)))

    vmem = (2 * _pad2(tm, k) * itm + 2 * _pad2(tm, n_pad) * itm
            + 2 * _pad2(k, n_pad) * 2 + 2 * _pad2(1, n_pad) * 4
            + 2 * _pad2(tm, n_pad) * 4)

    args = [x2d, wp]
    in_specs = [pl.BlockSpec((tm, k), lambda i: (i, 0)),
                pl.BlockSpec((k, n_pad), lambda i: (0, 0))]      # resident weights
    if b is not None:
        bp = b.astype(jnp.float32)
        if n_pad != nout:
            bp = jnp.pad(bp, (0, n_pad - nout))
        args.append(bp.reshape(1, n_pad))
        in_specs.append(pl.BlockSpec((1, n_pad), lambda i: (0, 0)))
        kern = partial(_linear_bias_kernel, mxu_dtype=mxu_dtype)
    else:
        kern = partial(_linear_nobias_kernel, mxu_dtype=mxu_dtype)

    out = pl.pallas_call(
        kern,
        out_shape=jax.ShapeDtypeStruct((m_pad, n_pad), x2d.dtype),
        grid=(m_pad // tm,),
        in_specs=in_specs,
        out_specs=pl.BlockSpec((tm, n_pad), lambda i: (i, 0)),
        compiler_params=pltpu.CompilerParams(
            dimension_semantics=("parallel",),
            vmem_limit_bytes=_vmem_limit_bytes(vmem)),
    )(*args)
    return out[:m, :nout]


# ----------------------------------------------------------------------------
# Pallas kernel 3: fused selective scan
#   dt_proj + softplus + dA/dBu construction + recurrence + C-contraction + u*D
#   fused in one kernel; dA/dBu/h-trajectory never leave VMEM.
# ----------------------------------------------------------------------------
def _fused_ssm_scan_kernel(u_ref, dtl_ref, b_ref, c_ref, dtw_ref, dtb_ref,
                           at_ref, dsk_ref, y_ref,
                           h_sc, da_sc, dbu_sc, hs_sc, *, unroll):
    # One grid step = (one batch, one d_inner chunk, one token chunk).
    @pl.when(pl.program_id(2) == 0)
    def _init():
        h_sc[...] = jnp.zeros_like(h_sc)

    tn, _ = u_ref.shape
    r = dtl_ref.shape[-1]

    u = u_ref[...].astype(jnp.float32)                       # (Tn, Dt)
    dtl = dtl_ref[...].astype(jnp.float32)                   # (Tn, R)

    # dt_proj folded in as a rank-R VPU outer product (K=dt_rank would waste MXU).
    acc = dtl[:, 0:1] * dtw_ref[0:1, :].astype(jnp.float32)
    for rr in range(1, r):
        acc = acc + dtl[:, rr:rr + 1] * dtw_ref[rr:rr + 1, :].astype(jnp.float32)
    dt = jax.nn.softplus(acc + dtb_ref[...].astype(jnp.float32))   # (Tn, Dt)
    dtu = dt * u

    at = at_ref[...].astype(jnp.float32)                     # (S, Dt) = A^T chunk
    bm = b_ref[...].astype(jnp.float32)                      # (Tn, S)
    cm = c_ref[...].astype(jnp.float32)                      # (Tn, S)

    # Chunk-vectorized dA / dBu (exp rides the EUP slot), VMEM scratch only.
    da_sc[...] = jnp.exp(dt[:, None, :] * at[None, :, :])    # (Tn, S, Dt)
    dbu_sc[...] = dtu[:, None, :] * bm[:, :, None]           # (Tn, S, Dt)

    # Sequential recurrence; h carried in vregs via the fori_loop carry.
    def body(t, h):
        h = da_sc[t] * h + dbu_sc[t]
        hs_sc[t] = h
        return h

    h_last = jax.lax.fori_loop(0, tn, body, h_sc[...], unroll=unroll)
    h_sc[...] = h_last                                       # carry across token chunks

    # Output contraction, vectorized over the chunk: y = sum_s h*C + u*D.
    y = jnp.sum(hs_sc[...] * cm[:, :, None], axis=1)
    y = y + u * dsk_ref[...].astype(jnp.float32)
    y_ref[...] = y.astype(y_ref.dtype)


def fused_ssm_scan(u, dt_low, Bm, Cm, dt_proj_w, dt_proj_b, A, Dskip, *,
                   token_chunk=256, d_chunk=256, unroll=4):
    B, N, Din = u.shape
    R = dt_low.shape[-1]
    S = Bm.shape[-1]

    # d_inner chunking ("parallel" grid axis; bounds VMEM, feeds both v7x cores).
    if Din > d_chunk and Din % d_chunk == 0 and d_chunk % 128 == 0:
        td = d_chunk
    else:
        td = Din
    nd = Din // td

    # Token chunking ("arbitrary" axis; state carried in VMEM scratch across chunks).
    tn = max(8, (min(token_chunk, _round_up(N, 8)) // 8) * 8)
    n_pad = _round_up(N, tn)
    if n_pad != N:
        pad = ((0, 0), (0, n_pad - N), (0, 0))
        u = jnp.pad(u, pad)
        dt_low = jnp.pad(dt_low, pad)
        Bm = jnp.pad(Bm, pad)
        Cm = jnp.pad(Cm, pad)
    nn = n_pad // tn

    f32 = jnp.float32
    at = A.T.astype(f32)                          # (S, Din)
    dtw = dt_proj_w.astype(f32)                   # (R, Din)
    dtb = dt_proj_b.reshape(1, Din).astype(f32)
    dsk = Dskip.reshape(1, Din).astype(f32)

    vmem = 4 * (2 * (_pad2(tn, td) + _pad2(tn, R) + 2 * _pad2(tn, S))
                + 2 * _pad2(tn, td)
                + 3 * tn * _pad2(S, td) + _pad2(S, td)
                + 2 * (_pad2(R, td) + 3 * _pad2(1, td) + _pad2(S, td)))

    y = pl.pallas_call(
        partial(_fused_ssm_scan_kernel, unroll=unroll),
        out_shape=jax.ShapeDtypeStruct((B, n_pad, Din), jnp.float32),
        grid=(B, nd, nn),
        in_specs=[
            pl.BlockSpec((None, tn, td), lambda b, d, n: (b, n, d)),   # u
            pl.BlockSpec((None, tn, R), lambda b, d, n: (b, n, 0)),    # dt_low
            pl.BlockSpec((None, tn, S), lambda b, d, n: (b, n, 0)),    # B
            pl.BlockSpec((None, tn, S), lambda b, d, n: (b, n, 0)),    # C
            pl.BlockSpec((R, td), lambda b, d, n: (0, d)),             # dt_proj_w
            pl.BlockSpec((1, td), lambda b, d, n: (0, d)),             # dt_proj_b
            pl.BlockSpec((S, td), lambda b, d, n: (0, d)),             # A^T
            pl.BlockSpec((1, td), lambda b, d, n: (0, d)),             # D skip
        ],
        out_specs=pl.BlockSpec((None, tn, td), lambda b, d, n: (b, n, d)),
        scratch_shapes=[
            pltpu.VMEM((S, td), jnp.float32),        # h carried across token chunks
            pltpu.VMEM((tn, S, td), jnp.float32),    # dA   (VMEM only, never HBM)
            pltpu.VMEM((tn, S, td), jnp.float32),    # dBu  (VMEM only, never HBM)
            pltpu.VMEM((tn, S, td), jnp.float32),    # h trajectory (VMEM only)
        ],
        compiler_params=pltpu.CompilerParams(
            dimension_semantics=("parallel", "parallel", "arbitrary"),
            vmem_limit_bytes=_vmem_limit_bytes(vmem)),
    )(u.astype(f32), dt_low.astype(f32), Bm.astype(f32), Cm.astype(f32),
      dtw, dtb, at, dsk)
    return y[:, :N, :]


# ----------------------------------------------------------------------------
# ops with a pure-JAX fallback (use_pallas=False gives the numerical reference)
# ----------------------------------------------------------------------------
def _ln_op(x2d, w, b, eps, use_pallas):
    if use_pallas:
        return layer_norm(x2d, w, b, eps=eps)
    mu = jnp.mean(x2d, axis=-1, keepdims=True)
    var = jnp.mean((x2d - mu) ** 2, axis=-1, keepdims=True)
    return (x2d - mu) * jax.lax.rsqrt(var + eps) * w + b


def _linear_op(x2d, w, b, use_pallas):
    if use_pallas:
        return linear(x2d, w, b)
    y = x2d @ w
    if b is not None:
        y = y + b
    return y


def _fused_scan_op(u, dt_low, Bm, Cm, dtw, dtb, A, Dskip, use_pallas):
    if use_pallas:
        return fused_ssm_scan(u, dt_low, Bm, Cm, dtw, dtb, A, Dskip)
    dt = jax.nn.softplus(jnp.einsum("bnr,rd->bnd", dt_low, dtw) + dtb[None, None, :])
    dA = jnp.exp(jnp.einsum("bnd,ds->bnsd", dt, A))
    dBu = jnp.einsum("bnd,bns->bnsd", dt * u, Bm)

    def step(h, ab):
        a, b_ = ab
        h = a * h + b_
        return h, h

    def per_batch(a_b, b_b):
        h0 = jnp.zeros(a_b.shape[1:], jnp.float32)
        _, hs = jax.lax.scan(step, h0, (a_b, b_b))
        return hs

    hs = jax.vmap(per_batch)(dA.astype(jnp.float32), dBu.astype(jnp.float32))
    return jnp.einsum("bnsd,bns->bnd", hs, Cm) + u * Dskip[None, None, :]


# ----------------------------------------------------------------------------
# MambaLayer forward (glue + Pallas kernels)
# ----------------------------------------------------------------------------
def _causal_dwconv1d(x, w, b):
    # x: (B, N, D); w: (D, K); b: (D,). Causal depthwise conv over tokens.
    B, N, D = x.shape
    K = w.shape[1]
    xp = jnp.pad(x, ((0, 0), (K - 1, 0), (0, 0)))
    out = jnp.zeros((B, N, D), x.dtype)
    for k in range(K):
        out = out + xp[:, k:k + N, :] * w[None, None, :, k]
    return out + b[None, None, :]


def _mamba_block(x, p, use_pallas):
    # Standard (unidirectional) selective-scan Mamba block.
    # TODO(synk): bimamba_type='v3' backward / cross-direction scans not reproduced.
    B, N, C = x.shape
    d_inner = p["in_proj_w"].shape[1] // 2
    d_state = p["A_log"].shape[1]
    dt_rank = p["dt_proj_w"].shape[0]

    xz = _linear_op(x.reshape(-1, C), p["in_proj_w"], None, use_pallas)
    xz = xz.reshape(B, N, 2 * d_inner)
    xc, z = jnp.split(xz, 2, axis=-1)

    u = jax.nn.silu(_causal_dwconv1d(xc, p["conv1d_w"], p["conv1d_b"]))

    dbc = _linear_op(u.reshape(-1, d_inner), p["x_proj_w"], None, use_pallas)
    dbc = dbc.reshape(B, N, dt_rank + 2 * d_state)
    dt_low = dbc[..., :dt_rank]
    Bm = dbc[..., dt_rank:dt_rank + d_state]
    Cm = dbc[..., dt_rank + d_state:]

    A = -jnp.exp(p["A_log"])                                  # (d_inner, d_state)
    # dt_proj + softplus + dA/dBu + scan + C-contraction + u*D fused in one kernel.
    y = _fused_scan_op(u, dt_low, Bm, Cm, p["dt_proj_w"], p["dt_proj_b"],
                       A, p["D"], use_pallas)                 # (B, N, d_inner)

    y = y * jax.nn.silu(z)
    out = _linear_op(y.reshape(-1, d_inner), p["out_proj_w"], None, use_pallas)
    return out.reshape(B, N, C)


def _mlp_block(x, p, nf, H, W, use_pallas):
    B, N, C = x.shape
    hidden = p["fc1_w"].shape[1]
    h = _linear_op(x.reshape(-1, C), p["fc1_w"], p["fc1_b"], use_pallas)
    # DWConv in channels-last layout: (B, N, hidden) reshapes straight to
    # (B, nf, H, W, hidden) -> no (B,C,N) transposes around the conv.
    # TODO(synk): grouped Conv3d left to XLA (no clean Pallas equivalent here).
    hh = h.reshape(B, nf, H, W, hidden)
    w_dhwio = jnp.transpose(p["dw_w"], (2, 3, 4, 1, 0))       # (3,3,3,1,hidden)
    hh = jax.lax.conv_general_dilated(
        hh, w_dhwio, window_strides=(1, 1, 1),
        padding=((1, 1), (1, 1), (1, 1)),
        dimension_numbers=("NDHWC", "DHWIO", "NDHWC"),
        feature_group_count=hidden)
    hh = hh + p["dw_b"][None, None, None, None, :]
    h = hh.reshape(B, N, hidden)
    h = jax.nn.gelu(h, approximate=False)                     # nn.GELU default (exact)
    o = _linear_op(h.reshape(-1, hidden), p["fc2_w"], p["fc2_b"], use_pallas)
    return o.reshape(B, N, C)


def mamba_layer_forward(x, p, use_pallas=True, eps=1e-5):
    B, C, nf, H, W = x.shape
    N = nf * H * W
    # TODO(synk): the entry/exit (B,C,N)<->(B,N,C) transposes mirror the module's
    # own reshape/transpose and are left to XLA; DWConv transposes were removed.
    x_flat = x.reshape(B, C, N).transpose(0, 2, 1)            # (B, N, C) tokens
    h1 = _ln_op(x_flat.reshape(-1, C), p["ln1_w"], p["ln1_b"], eps,
                use_pallas).reshape(B, N, C)
    x1 = x_flat + _mamba_block(h1, p, use_pallas)             # drop_path = Identity
    h2 = _ln_op(x1.reshape(-1, C), p["ln2_w"], p["ln2_b"], eps,
                use_pallas).reshape(B, N, C)
    x2 = x1 + _mlp_block(h2, p, nf, H, W, use_pallas)         # dropout p = 0
    return x2.transpose(0, 2, 1).reshape(B, C, nf, H, W)


# ----------------------------------------------------------------------------
# deterministic parameter construction (matches the module's shapes/init style)
# ----------------------------------------------------------------------------
def init_params(key, dim, d_state=16, d_conv=4, expand=2, mlp_ratio=4):
    d_inner = expand * dim
    dt_rank = math.ceil(dim / 16)
    hidden = int(dim * mlp_ratio)
    ks = jax.random.split(key, 10)

    def tn(k, shape, std=0.02):
        return std * jax.random.normal(k, shape, jnp.float32)

    return {
        "ln1_w": jnp.ones((dim,), jnp.float32), "ln1_b": jnp.zeros((dim,), jnp.float32),
        "ln2_w": jnp.ones((dim,), jnp.float32), "ln2_b": jnp.zeros((dim,), jnp.float32),
        "in_proj_w": tn(ks[0], (dim, 2 * d_inner)),
        "conv1d_w": tn(ks[1], (d_inner, d_conv), std=0.2),
        "conv1d_b": jnp.zeros((d_inner,), jnp.float32),
        "x_proj_w": tn(ks[2], (d_inner, dt_rank + 2 * d_state)),
        "dt_proj_w": tn(ks[3], (dt_rank, d_inner), std=0.1),
        "dt_proj_b": jnp.full((d_inner,), -2.0, jnp.float32)
                     + 0.1 * jax.random.normal(ks[4], (d_inner,), jnp.float32),
        "A_log": jnp.log(jnp.broadcast_to(
            jnp.arange(1, d_state + 1, dtype=jnp.float32), (d_inner, d_state))),
        "D": jnp.ones((d_inner,), jnp.float32),
        "out_proj_w": tn(ks[5], (d_inner, dim)),
        "fc1_w": tn(ks[6], (dim, hidden)),
        "fc1_b": jnp.zeros((hidden,), jnp.float32),
        "dw_w": tn(ks[7], (hidden, 1, 3, 3, 3), std=math.sqrt(2.0 / 27.0)),
        "dw_b": jnp.zeros((hidden,), jnp.float32),
        "fc2_w": tn(ks[8], (hidden, dim)),
        "fc2_b": jnp.zeros((dim,), jnp.float32),
    }


if __name__ == "__main__":
    key = jax.random.PRNGKey(0)
    k_x, k_p = jax.random.split(key)

    # Small MambaLayer config: dim=32, d_state=16, d_conv=4, expand=2, mlp_ratio=4
    dim, nf, H, W, B = 32, 4, 8, 8, 2
    params = init_params(k_p, dim)
    x = jax.random.normal(k_x, (B, dim, nf, H, W), jnp.float32)

    out = mamba_layer_forward(x, params, use_pallas=True)
    out = jax.block_until_ready(out)
    assert out.shape == x.shape
    assert bool(jnp.all(jnp.isfinite(out)))

    # Pure-JAX f32 reference of the identical forward (same params, same glue).
    ref = mamba_layer_forward(x, params, use_pallas=False)
    ref = jax.block_until_ready(ref)
    max_err = float(jnp.max(jnp.abs(out - ref)))
    assert max_err < 2e-2, f"mismatch vs reference: max abs err = {max_err}"

    print("KERNEL_OK")
</pallas_src>

<mosaic_0001>
module attributes {stable_mosaic.version = 11 : i64} {
  func.func @_layernorm_kernel_packed(%arg0: i32, %arg1: memref<128x128xf32, #tpu.memory_space<vmem>>, %arg2: memref<1x128xf32, #tpu.memory_space<vmem>>, %arg3: memref<1x128xf32, #tpu.memory_space<vmem>>, %arg4: memref<128x128xf32, #tpu.memory_space<vmem>>, %arg5: memref<128x128xf32, #tpu.memory_space<vmem>>) attributes {dimension_semantics = [#tpu.dimension_semantics<parallel>], iteration_bounds = array<i64: 1>, scalar_prefetch = 0 : i64, scratch_operands = 0 : i64, tpu.core_type = #tpu.core_type<tc>, window_params = [{transform_indices = @transform_0, window_bounds = array<i64: 128, 128>}, {pipeline_mode = #tpu.pipeline_mode<synchronous>, transform_indices = @transform_1, window_bounds = array<i64: 1, 128>}, {pipeline_mode = #tpu.pipeline_mode<synchronous>, transform_indices = @transform_2, window_bounds = array<i64: 1, 128>}, {pipeline_mode = #tpu.pipeline_mode<synchronous>, transform_indices = @transform_3, window_bounds = array<i64: 128, 128>}, {transform_indices = @transform_4, window_bounds = array<i64: 128, 128>}]} {
    %c0 = arith.constant 0 : index
    %c0_0 = arith.constant 0 : index
    %0 = vector.load %arg1[%c0, %c0_0] : memref<128x128xf32, #tpu.memory_space<vmem>>, vector<128x128xf32>
    %c0_1 = arith.constant 0 : index
    %c0_2 = arith.constant 0 : index
    %1 = vector.load %arg4[%c0_1, %c0_2] : memref<128x128xf32, #tpu.memory_space<vmem>>, vector<128x128xf32>
    %cst = arith.constant dense<0.000000e+00> : vector<128x128xf32>
    %2 = tpu.matmul %0, %1, %cst {dimension_numbers = #tpu.dot_dimension_numbers<[1], [0], [0], [1], [0, 0, 1, 1], [], []>} : vector<128x128xf32>, vector<128x128xf32>, vector<128x128xf32> -> vector<128x128xf32>
    %3 = arith.mulf %0, %0 : vector<128x128xf32>
    %cst_3 = arith.constant dense<0.000000e+00> : vector<128x128xf32>
    %4 = tpu.matmul %3, %1, %cst_3 {dimension_numbers = #tpu.dot_dimension_numbers<[1], [0], [0], [1], [0, 0, 1, 1], [], []>} : vector<128x128xf32>, vector<128x128xf32>, vector<128x128xf32> -> vector<128x128xf32>
    %5 = arith.mulf %2, %2 : vector<128x128xf32>
    %6 = arith.subf %4, %5 : vector<128x128xf32>
    %7 = arith.subf %0, %2 : vector<128x128xf32>
    %cst_4 = arith.constant 9.99999974E-6 : f32
    %8 = vector.broadcast %cst_4 : f32 to vector<128x128xf32>
    %9 = arith.addf %6, %8 : vector<128x128xf32>
    %10 = math.rsqrt %9 : vector<128x128xf32>
    %11 = arith.mulf %7, %10 : vector<128x128xf32>
    %c0_5 = arith.constant 0 : index
    %c0_6 = arith.constant 0 : index
    %12 = vector.load %arg2[%c0_5, %c0_6] : memref<1x128xf32, #tpu.memory_space<vmem>>, vector<1x128xf32>
    %13 = vector.broadcast %12 : vector<1x128xf32> to vector<128x128xf32>
    %14 = arith.mulf %11, %13 : vector<128x128xf32>
    %c0_7 = arith.constant 0 : index
    %c0_8 = arith.constant 0 : index
    %15 = vector.load %arg3[%c0_7, %c0_8] : memref<1x128xf32, #tpu.memory_space<vmem>>, vector<1x128xf32>
    %16 = vector.broadcast %15 : vector<1x128xf32> to vector<128x128xf32>
    %17 = arith.addf %14, %16 : vector<128x128xf32>
    %c0_9 = arith.constant 0 : index
    %c0_10 = arith.constant 0 : index
    %18 = vector.load %arg5[%c0_9, %c0_10] : memref<128x128xf32, #tpu.memory_space<vmem>>, vector<128x128xf32>
    tpu.vector_store %arg5[%c0_9, %c0_10], %17 {strides = array<i32>} : memref<128x128xf32, #tpu.memory_space<vmem>>, vector<128x128xf32>,
    return
  }
  func.func @transform_0(%arg0: i32) -> (i32, i32) {
    %c0_i32 = arith.constant 0 : i32
    %c0_i32_0 = arith.constant 0 : i32
    return %arg0, %c0_i32 : i32, i32
  }
  func.func @transform_1(%arg0: i32) -> (i32, i32) {
    %c0_i32 = arith.constant 0 : i32
    %c0_i32_0 = arith.constant 0 : i32
    %c0_i32_1 = arith.constant 0 : i32
    return %c0_i32, %c0_i32_0 : i32, i32
  }
  func.func @transform_2(%arg0: i32) -> (i32, i32) {
    %c0_i32 = arith.constant 0 : i32
    %c0_i32_0 = arith.constant 0 : i32
    %c0_i32_1 = arith.constant 0 : i32
    return %c0_i32, %c0_i32_0 : i32, i32
  }
  func.func @transform_3(%arg0: i32) -> (i32, i32) {
    %c0_i32 = arith.constant 0 : i32
    %c0_i32_0 = arith.constant 0 : i32
    %c0_i32_1 = arith.constant 0 : i32
    return %c0_i32, %c0_i32_0 : i32, i32
  }
  func.func @transform_4(%arg0: i32) -> (i32, i32) {
    %c0_i32 = arith.constant 0 : i32
    %c0_i32_0 = arith.constant 0 : i32
    return %arg0, %c0_i32 : i32, i32
  }
}

</mosaic_0001>

<llo_original>
// kernel: tpu_custom_call.1
$region0: #{tpu_custom_call.1}
  #allocation0 [shape = 'u32[]', space=smem, size = 0x4, offset = 0x4, fixed_abs, tag = 'smem constant byte address 0x4 - core index']
  #allocation1 [shape = 'u32[144,128]{1,0:T(1,128)}', space=vmem, size = 0x12000, scoped, tag = 'internal scratch']
  %s0 = inlined_call_operand.hbm [shape: f32[128,128], index: 0, kind: input, shape index: {}]
  %s1 = inlined_call_operand.vmem [shape: f32[1,128], index: 1, kind: input, shape index: {}]
  %s2 = inlined_call_operand.vmem [shape: f32[1,128], index: 2, kind: input, shape index: {}]
  %s3 = inlined_call_operand.hbm [shape: f32[128,128], index: 3, kind: input, shape index: {}]
  %s4 = inlined_call_operand.hbm [shape: f32[128,128], index: 4, kind: output, shape index: {}]
  %s5 = sld [smem:[#allocation0]]
  $region34: #{tpu_custom_call.1} parent=0
    _
  %s7 = ssub.s32 1, %s5
  %s8 = scalar_select 0, %s7, %s5
  $region1: #{tpu_custom_call.1} parent=0
    #allocation2 [shape = 'u8[65536]{0}', space=vmem, size = 0x10000, scoped, tag = 'input window, operand 0, single buffered']
    #allocation3 [shape = 's32[1]{0}', space=sflag, size = 0x4, scoped, tag = 'scoped memory for tpu_custom_call.1']
    #allocation4 [shape = 's32[1]{0}', space=sflag, size = 0x4, scoped, tag = 'scoped memory for tpu_custom_call.1']
    #allocation5 [shape = 'u8[65536]{0}', space=vmem, size = 0x10000, scoped, tag = 'input window, operand 3, single buffered']
    #allocation6 [shape = 's32[1]{0}', space=sflag, size = 0x4, scoped, tag = 'scoped memory for tpu_custom_call.1']
    #allocation7 [shape = 'u8[65536]{0}', space=vmem, size = 0x10000, scoped, tag = 'output window, operand 0, single buffered']
    %9 = vsyncpa [#allocation3], 0
    %10 = vsyncpa [#allocation6], 0
    %11 = vsyncpa [#allocation4], 0
    // Predicated region
    $region2: #{tpu_custom_call.1} parent=1 // pred_check
      _
    $region3: #{tpu_custom_call.1} parent=1 // pred_check_branch
      %13 = sbr.rel (0) target = $region5
    $region4: #{tpu_custom_call.1} parent=1 // pred_region
      %s15 = ssub.s32 2048, 2048
      %16 = vsyncadd [#allocation3], %s15
      %s17 = sshll.u32 [#allocation2], 4
      %s18 = int_to_ptr.vmem [resolvable:$true] %s17
      %23 = dma.hbm_to_vmem [thread:$0]  %s0, 2048, %s18, [#allocation3], 128, 128, 8
    $region5: #{tpu_custom_call.1} parent=1 // pred_fallthru
      _
    // Predicated region
    $region6: #{tpu_custom_call.1} parent=1 // pred_check
      _
    $region7: #{tpu_custom_call.1} parent=1 // pred_check_branch
      %25 = sbr.rel (0) target = $region9
    $region8: #{tpu_custom_call.1} parent=1 // pred_region
      _
    $region9: #{tpu_custom_call.1} parent=1 // pred_fallthru
      _
    // Predicated region
    $region10: #{tpu_custom_call.1} parent=1 // pred_check
      _
    $region11: #{tpu_custom_call.1} parent=1 // pred_check_branch
      %27 = sbr.rel (0) target = $region13
    $region12: #{tpu_custom_call.1} parent=1 // pred_region
      _
    $region13: #{tpu_custom_call.1} parent=1 // pred_fallthru
      _
    // Predicated region
    $region14: #{tpu_custom_call.1} parent=1 // pred_check
      _
    $region15: #{tpu_custom_call.1} parent=1 // pred_check_branch
      %29 = sbr.rel (0) target = $region17
    $region16: #{tpu_custom_call.1} parent=1 // pred_region
      %s31 = ssub.s32 2048, 2048
      %32 = vsyncadd [#allocation6], %s31
      %s33 = sshll.u32 [#allocation5], 4
      %s34 = int_to_ptr.vmem [resolvable:$true] %s33
      %39 = dma.hbm_to_vmem [thread:$0]  %s3, 2048, %s34, [#allocation6], 128, 128, 8
    $region17: #{tpu_custom_call.1} parent=1 // pred_fallthru
      _
    // Predicated region
    $region18: #{tpu_custom_call.1} parent=1 // pred_check
      _
    $region19: #{tpu_custom_call.1} parent=1 // pred_check_branch
      %41 = sbr.rel (0) target = $region21
    $region20: #{tpu_custom_call.1} parent=1 // pred_region
      %42 = dma.done [#allocation3], 2048
    $region21: #{tpu_custom_call.1} parent=1 // pred_fallthru
      _
    // Predicated region
    $region22: #{tpu_custom_call.1} parent=1 // pred_check
      _
    $region23: #{tpu_custom_call.1} parent=1 // pred_check_branch
      %44 = sbr.rel (0) target = $region25
    $region24: #{tpu_custom_call.1} parent=1 // pred_region
      %45 = dma.done [#allocation6], 2048
    $region25: #{tpu_custom_call.1} parent=1 // pred_fallthru
      _
    %v46 = vld [vmem:[#allocation2] sm:$0xff]
    %v47 = vld [vmem:[#allocation2 + $0x8] sm:$0xff]
    %v48 = vld [vmem:[#allocation2 + $0x10] sm:$0xff]
    %v49 = vld [vmem:[#allocation2 + $0x18] sm:$0xff]
    %v50 = vld [vmem:[#allocation2 + $0x20] sm:$0xff]
    %v51 = vld [vmem:[#allocation2 + $0x28] sm:$0xff]
    %v52 = vld [vmem:[#allocation2 + $0x30] sm:$0xff]
    %v53 = vld [vmem:[#allocation2 + $0x38] sm:$0xff]
    %v54 = vld [vmem:[#allocation2 + $0x40] sm:$0xff]
    %v55 = vld [vmem:[#allocation2 + $0x48] sm:$0xff]
    %v56 = vld [vmem:[#allocation2 + $0x50] sm:$0xff]
    %v57 = vld [vmem:[#allocation2 + $0x58] sm:$0xff]
    %v58 = vld [vmem:[#allocation2 + $0x60] sm:$0xff]
    %v59 = vld [vmem:[#allocation2 + $0x68] sm:$0xff]
    %v60 = vld [vmem:[#allocation2 + $0x70] sm:$0xff]
    %v61 = vld [vmem:[#allocation2 + $0x78] sm:$0xff]
    %v62 = vld [vmem:[#allocation5] sm:$0xff]
    %v63 = vld [vmem:[#allocation5 + $0x8] sm:$0xff]
    %v64 = vld [vmem:[#allocation5 + $0x10] sm:$0xff]
    %v65 = vld [vmem:[#allocation5 + $0x18] sm:$0xff]
    %v66 = vld [vmem:[#allocation5 + $0x20] sm:$0xff]
    %v67 = vld [vmem:[#allocation5 + $0x28] sm:$0xff]
    %v68 = vld [vmem:[#allocation5 + $0x30] sm:$0xff]
    %v69 = vld [vmem:[#allocation5 + $0x38] sm:$0xff]
    %v70 = vld [vmem:[#allocation5 + $0x40] sm:$0xff]
    %v71 = vld [vmem:[#allocation5 + $0x48] sm:$0xff]
    %v72 = vld [vmem:[#allocation5 + $0x50] sm:$0xff]
    %v73 = vld [vmem:[#allocation5 + $0x58] sm:$0xff]
    %v74 = vld [vmem:[#allocation5 + $0x60] sm:$0xff]
    %v75 = vld [vmem:[#allocation5 + $0x68] sm:$0xff]
    %v76 = vld [vmem:[#allocation5 + $0x70] sm:$0xff]
    %v77 = vld [vmem:[#allocation5 + $0x78] sm:$0xff]
    %78 = vmatprep.subr.mxu0 0.0
    %79 = vmatpush1.msra.mxu0 %v62
    %80 = vmatprep.subr.mxu0 0.0
    %81 = vmatpush1.msra.mxu0 %v63
    %82 = vmatprep.subr.mxu0 0.0
    %83 = vmatpush1.msra.mxu0 %v64
    %84 = vmatprep.subr.mxu0 0.0
    %85 = vmatpush1.msra.mxu0 %v65
    %86 = vmatprep.subr.mxu0 0.0
    %87 = vmatpush1.msra.mxu0 %v66
    %88 = vmatprep.subr.mxu0 0.0
    %89 = vmatpush1.msra.mxu0 %v67
    %90 = vmatprep.subr.mxu0 0.0
    %91 = vmatpush1.msra.mxu0 %v68
    %92 = vmatprep.subr.mxu0 0.0
    %93 = vmatpush1.msra.mxu0 %v69
    %94 = vmatprep.subr.mxu0 0.0
    %95 = vmatpush1.msra.mxu0 %v70
    %96 = vmatprep.subr.mxu0 0.0
    %97 = vmatpush1.msra.mxu0 %v71
    %98 = vmatprep.subr.mxu0 0.0
    %99 = vmatpush1.msra.mxu0 %v72
    %100 = vmatprep.subr.mxu0 0.0
    %101 = vmatpush1.msra.mxu0 %v73
    %102 = vmatprep.subr.mxu0 0.0
    %103 = vmatpush1.msra.mxu0 %v74
    %104 = vmatprep.subr.mxu0 0.0
    %105 = vmatpush1.msra.mxu0 %v75
    %106 = vmatprep.subr.mxu0 0.0
    %107 = vmatpush1.msra.mxu0 %v76
    %108 = vmatprep.subr.mxu0 0.0
    %109 = vmatpush1.msra.mxu0 %v77
    %110 = vmatprep.subr.mxu0 0.0
    %111 = vmatpush1.msra.mxu0 0.0
    %112 = vmatprep.subr.mxu0 0.0
    %113 = vmatpush1.msra.mxu0 0.0
    %114 = vmatprep.subr.mxu0 0.0
    %115 = vmatpush1.msra.mxu0 0.0
    %116 = vmatprep.subr.mxu0 0.0
    %117 = vmatpush1.msra.mxu0 0.0
    %118 = vmatprep.subr.mxu0 0.0
    %119 = vmatpush1.msra.mxu0 0.0
    %120 = vmatprep.subr.mxu0 0.0
    %121 = vmatpush1.msra.mxu0 0.0
    %122 = vmatprep.subr.mxu0 0.0
    %123 = vmatpush1.msra.mxu0 0.0
    %124 = vmatprep.subr.mxu0 0.0
    %125 = vmatpush1.msra.mxu0 0.0
    %126 = vmatprep.subr.mxu0 0.0
    %127 = vmatpush1.msra.mxu0 0.0
    %128 = vmatprep.subr.mxu0 0.0
    %129 = vmatpush1.msra.mxu0 0.0
    %130 = vmatprep.subr.mxu0 0.0
    %131 = vmatpush1.msra.mxu0 0.0
    %132 = vmatprep.subr.mxu0 0.0
    %133 = vmatpush1.msra.mxu0 0.0
    %134 = vmatprep.subr.mxu0 0.0
    %135 = vmatpush1.msra.mxu0 0.0
    %136 = vmatprep.subr.mxu0 0.0
    %137 = vmatpush1.msra.mxu0 0.0
    %138 = vmatprep.subr.mxu0 0.0
    %139 = vmatpush1.msra.mxu0 0.0
    %140 = vmatprep.subr.mxu0 0.0
    %141 = vmatpush1.msra.mxu0 0.0
    %142 = vmatprep.mubr.f32.mxu0 0.0
    %143 = vmatmul.mubr.f32.gmra.mrb[0].mxu0 %v46
    %v144 = vpop.f32.mrb[0].mxu0
    %v145 = vadd.f32 0.0, %v144
    %v146 = vpop.f32.mrb[0].mxu0
    %147 = vmatprep.mubr.f32.mxu0 0.0
    %148 = vmatmul.mubr.f32.gmra.mrb[0].mxu0 %v47
    %v149 = vpop.f32.mrb[0].mxu0
    %v150 = vadd.f32 0.0, %v149
    %v151 = vpop.f32.mrb[0].mxu0
    %152 = vmatprep.mubr.f32.mxu0 0.0
    %153 = vmatmul.mubr.f32.gmra.mrb[0].mxu0 %v48
    %v154 = vpop.f32.mrb[0].mxu0
    %v155 = vadd.f32 0.0, %v154
    %v156 = vpop.f32.mrb[0].mxu0
    %157 = vmatprep.mubr.f32.mxu0 0.0
    %158 = vmatmul.mubr.f32.gmra.mrb[0].mxu0 %v49
    %v159 = vpop.f32.mrb[0].mxu0
    %v160 = vadd.f32 0.0, %v159
    %v161 = vpop.f32.mrb[0].mxu0
    %162 = vmatprep.mubr.f32.mxu0 0.0
    %163 = vmatmul.mubr.f32.gmra.mrb[0].mxu0 %v50
    %v164 = vpop.f32.mrb[0].mxu0
    %v165 = vadd.f32 0.0, %v164
    %v166 = vpop.f32.mrb[0].mxu0
    %167 = vmatprep.mubr.f32.mxu0 0.0
    %168 = vmatmul.mubr.f32.gmra.mrb[0].mxu0 %v51
    %v169 = vpop.f32.mrb[0].mxu0
    %v170 = vadd.f32 0.0, %v169
    %v171 = vpop.f32.mrb[0].mxu0
    %172 = vmatprep.mubr.f32.mxu0 0.0
    %173 = vmatmul.mubr.f32.gmra.mrb[0].mxu0 %v52
    %v174 = vpop.f32.mrb[0].mxu0
    %v175 = vadd.f32 0.0, %v174
    %v176 = vpop.f32.mrb[0].mxu0
    %177 = vmatprep.mubr.f32.mxu0 0.0
    %178 = vmatmul.mubr.f32.gmra.mrb[0].mxu0 %v53
    %v179 = vpop.f32.mrb[0].mxu0
    %v180 = vadd.f32 0.0, %v179
    %v181 = vpop.f32.mrb[0].mxu0
    %182 = vmatprep.mubr.f32.mxu0 0.0
    %183 = vmatmul.mubr.f32.gmra.mrb[0].mxu0 %v54
    %v184 = vpop.f32.mrb[0].mxu0
    %v185 = vadd.f32 0.0, %v184
    %v186 = vpop.f32.mrb[0].mxu0
    %187 = vmatprep.mubr.f32.mxu0 0.0
    %188 = vmatmul.mubr.f32.gmra.mrb[0].mxu0 %v55
    %v189 = vpop.f32.mrb[0].mxu0
    %v190 = vadd.f32 0.0, %v189
    %v191 = vpop.f32.mrb[0].mxu0
    %192 = vmatprep.mubr.f32.mxu0 0.0
    %193 = vmatmul.mubr.f32.gmra.mrb[0].mxu0 %v56
    %v194 = vpop.f32.mrb[0].mxu0
    %v195 = vadd.f32 0.0, %v194
    %v196 = vpop.f32.mrb[0].mxu0
    %197 = vmatprep.mubr.f32.mxu0 0.0
    %198 = vmatmul.mubr.f32.gmra.mrb[0].mxu0 %v57
    %v199 = vpop.f32.mrb[0].mxu0
    %v200 = vadd.f32 0.0, %v199
    %v201 = vpop.f32.mrb[0].mxu0
    %202 = vmatprep.mubr.f32.mxu0 0.0
    %203 = vmatmul.mubr.f32.gmra.mrb[0].mxu0 %v58
    %v204 = vpop.f32.mrb[0].mxu0
    %v205 = vadd.f32 0.0, %v204
    %v206 = vpop.f32.mrb[0].mxu0
    %207 = vmatprep.mubr.f32.mxu0 0.0
    %208 = vmatmul.mubr.f32.gmra.mrb[0].mxu0 %v59
    %v209 = vpop.f32.mrb[0].mxu0
    %v210 = vadd.f32 0.0, %v209
    %v211 = vpop.f32.mrb[0].mxu0
    %212 = vmatprep.mubr.f32.mxu0 0.0
    %213 = vmatmul.mubr.f32.gmra.mrb[0].mxu0 %v60
    %v214 = vpop.f32.mrb[0].mxu0
    %v215 = vadd.f32 0.0, %v214
    %v216 = vpop.f32.mrb[0].mxu0
    %217 = vmatprep.mubr.f32.mxu0 0.0
    %218 = vmatmul.mubr.f32.gmra.mrb[0].mxu0 %v61
    %v219 = vpop.f32.mrb[0].mxu0
    %v220 = vadd.f32 0.0, %v219
    %v221 = vpop.f32.mrb[0].mxu0
    %222 = vdwg.mxu0
    %v223 = vmul.f32 %v46, %v46
    %v224 = vmul.f32 %v47, %v47
    %v225 = vmul.f32 %v48, %v48
    %v226 = vmul.f32 %v49, %v49
    %v227 = vmul.f32 %v50, %v50
    %v228 = vmul.f32 %v51, %v51
    %v229 = vmul.f32 %v52, %v52
    %v230 = vmul.f32 %v53, %v53
    %v231 = vmul.f32 %v54, %v54
    %v232 = vmul.f32 %v55, %v55
    %v233 = vmul.f32 %v56, %v56
    %v234 = vmul.f32 %v57, %v57
    %v235 = vmul.f32 %v58, %v58
    %v236 = vmul.f32 %v59, %v59
    %v237 = vmul.f32 %v60, %v60
    %v238 = vmul.f32 %v61, %v61
    %239 = vmatprep.subr.mxu0 0.0
    %240 = vmatpush1.msra.mxu0 %v62
    %241 = vmatprep.subr.mxu0 0.0
    %242 = vmatpush1.msra.mxu0 %v63
    %243 = vmatprep.subr.mxu0 0.0
    %244 = vmatpush1.msra.mxu0 %v64
    %245 = vmatprep.subr.mxu0 0.0
    %246 = vmatpush1.msra.mxu0 %v65
    %247 = vmatprep.subr.mxu0 0.0
    %248 = vmatpush1.msra.mxu0 %v66
    %249 = vmatprep.subr.mxu0 0.0
    %250 = vmatpush1.msra.mxu0 %v67
    %251 = vmatprep.subr.mxu0 0.0
    %252 = vmatpush1.msra.mxu0 %v68
    %253 = vmatprep.subr.mxu0 0.0
    %254 = vmatpush1.msra.mxu0 %v69
    %255 = vmatprep.subr.mxu0 0.0
    %256 = vmatpush1.msra.mxu0 %v70
    %257 = vmatprep.subr.mxu0 0.0
    %258 = vmatpush1.msra.mxu0 %v71
    %259 = vmatprep.subr.mxu0 0.0
    %260 = vmatpush1.msra.mxu0 %v72
    %261 = vmatprep.subr.mxu0 0.0
    %262 = vmatpush1.msra.mxu0 %v73
    %263 = vmatprep.subr.mxu0 0.0
    %264 = vmatpush1.msra.mxu0 %v74
    %265 = vmatprep.subr.mxu0 0.0
    %266 = vmatpush1.msra.mxu0 %v75
    %267 = vmatprep.subr.mxu0 0.0
    %268 = vmatpush1.msra.mxu0 %v76
    %269 = vmatprep.subr.mxu0 0.0
    %270 = vmatpush1.msra.mxu0 %v77
    %271 = vmatprep.subr.mxu0 0.0
    %272 = vmatpush1.msra.mxu0 0.0
    %273 = vmatprep.subr.mxu0 0.0
    %274 = vmatpush1.msra.mxu0 0.0
    %275 = vmatprep.subr.mxu0 0.0
    %276 = vmatpush1.msra.mxu0 0.0
    %277 = vmatprep.subr.mxu0 0.0
    %278 = vmatpush1.msra.mxu0 0.0
    %279 = vmatprep.subr.mxu0 0.0
    %280 = vmatpush1.msra.mxu0 0.0
    %281 = vmatprep.subr.mxu0 0.0
    %282 = vmatpush1.msra.mxu0 0.0
    %283 = vmatprep.subr.mxu0 0.0
    %284 = vmatpush1.msra.mxu0 0.0
    %285 = vmatprep.subr.mxu0 0.0
    %286 = vmatpush1.msra.mxu0 0.0
    %287 = vmatprep.subr.mxu0 0.0
    %288 = vmatpush1.msra.mxu0 0.0
    %289 = vmatprep.subr.mxu0 0.0
    %290 = vmatpush1.msra.mxu0 0.0
    %291 = vmatprep.subr.mxu0 0.0
    %292 = vmatpush1.msra.mxu0 0.0
    %293 = vmatprep.subr.mxu0 0.0
    %294 = vmatpush1.msra.mxu0 0.0
    %295 = vmatprep.subr.mxu0 0.0
    %296 = vmatpush1.msra.mxu0 0.0
    %297 = vmatprep.subr.mxu0 0.0
    %298 = vmatpush1.msra.mxu0 0.0
    %299 = vmatprep.subr.mxu0 0.0
    %300 = vmatpush1.msra.mxu0 0.0
    %301 = vmatprep.subr.mxu0 0.0
    %302 = vmatpush1.msra.mxu0 0.0
    %303 = vmatprep.mubr.f32.mxu0 0.0
    %304 = vmatmul.mubr.f32.gmra.mrb[0].mxu0 %v223
    %v305 = vpop.f32.mrb[0].mxu0
    %v306 = vadd.f32 0.0, %v305
    %v307 = vpop.f32.mrb[0].mxu0
    %308 = vmatprep.mubr.f32.mxu0 0.0
    %309 = vmatmul.mubr.f32.gmra.mrb[0].mxu0 %v224
    %v310 = vpop.f32.mrb[0].mxu0
    %v311 = vadd.f32 0.0, %v310
    %v312 = vpop.f32.mrb[0].mxu0
    %313 = vmatprep.mubr.f32.mxu0 0.0
    %314 = vmatmul.mubr.f32.gmra.mrb[0].mxu0 %v225
    %v315 = vpop.f32.mrb[0].mxu0
    %v316 = vadd.f32 0.0, %v315
    %v317 = vpop.f32.mrb[0].mxu0
    %318 = vmatprep.mubr.f32.mxu0 0.0
    %319 = vmatmul.mubr.f32.gmra.mrb[0].mxu0 %v226
    %v320 = vpop.f32.mrb[0].mxu0
    %v321 = vadd.f32 0.0, %v320
    %v322 = vpop.f32.mrb[0].mxu0
    %323 = vmatprep.mubr.f32.mxu0 0.0
    %324 = vmatmul.mubr.f32.gmra.mrb[0].mxu0 %v227
    %v325 = vpop.f32.mrb[0].mxu0
    %v326 = vadd.f32 0.0, %v325
    %v327 = vpop.f32.mrb[0].mxu0
    %328 = vmatprep.mubr.f32.mxu0 0.0
    %329 = vmatmul.mubr.f32.gmra.mrb[0].mxu0 %v228
    %v330 = vpop.f32.mrb[0].mxu0
    %v331 = vadd.f32 0.0, %v330
    %v332 = vpop.f32.mrb[0].mxu0
    %333 = vmatprep.mubr.f32.mxu0 0.0
    %334 = vmatmul.mubr.f32.gmra.mrb[0].mxu0 %v229
    %v335 = vpop.f32.mrb[0].mxu0
    %v336 = vadd.f32 0.0, %v335
    %v337 = vpop.f32.mrb[0].mxu0
    %338 = vmatprep.mubr.f32.mxu0 0.0
    %339 = vmatmul.mubr.f32.gmra.mrb[0].mxu0 %v230
    %v340 = vpop.f32.mrb[0].mxu0
    %v341 = vadd.f32 0.0, %v340
    %v342 = vpop.f32.mrb[0].mxu0
    %343 = vmatprep.mubr.f32.mxu0 0.0
    %344 = vmatmul.mubr.f32.gmra.mrb[0].mxu0 %v231
    %v345 = vpop.f32.mrb[0].mxu0
    %v346 = vadd.f32 0.0, %v345
    %v347 = vpop.f32.mrb[0].mxu0
    %348 = vmatprep.mubr.f32.mxu0 0.0
    %349 = vmatmul.mubr.f32.gmra.mrb[0].mxu0 %v232
    %v350 = vpop.f32.mrb[0].mxu0
    %v351 = vadd.f32 0.0, %v350
    %v352 = vpop.f32.mrb[0].mxu0
    %353 = vmatprep.mubr.f32.mxu0 0.0
    %354 = vmatmul.mubr.f32.gmra.mrb[0].mxu0 %v233
    %v355 = vpop.f32.mrb[0].mxu0
    %v356 = vadd.f32 0.0, %v355
    %v357 = vpop.f32.mrb[0].mxu0
    %358 = vmatprep.mubr.f32.mxu0 0.0
    %359 = vmatmul.mubr.f32.gmra.mrb[0].mxu0 %v234
    %v360 = vpop.f32.mrb[0].mxu0
    %v361 = vadd.f32 0.0, %v360
    %v362 = vpop.f32.mrb[0].mxu0
    %363 = vmatprep.mubr.f32.mxu0 0.0
    %364 = vmatmul.mubr.f32.gmra.mrb[0].mxu0 %v235
    %v365 = vpop.f32.mrb[0].mxu0
    %v366 = vadd.f32 0.0, %v365
    %v367 = vpop.f32.mrb[0].mxu0
    %368 = vmatprep.mubr.f32.mxu0 0.0
    %369 = vmatmul.mubr.f32.gmra.mrb[0].mxu0 %v236
    %v370 = vpop.f32.mrb[0].mxu0
    %v371 = vadd.f32 0.0, %v370
    %v372 = vpop.f32.mrb[0].mxu0
    %373 = vmatprep.mubr.f32.mxu0 0.0
    %374 = vmatmul.mubr.f32.gmra.mrb[0].mxu0 %v237
    %v375 = vpop.f32.mrb[0].mxu0
    %v376 = vadd.f32 0.0, %v375
    %v377 = vpop.f32.mrb[0].mxu0
    %378 = vmatprep.mubr.f32.mxu0 0.0
    %379 = vmatmul.mubr.f32.gmra.mrb[0].mxu0 %v238
    %v380 = vpop.f32.mrb[0].mxu0
    %v381 = vadd.f32 0.0, %v380
    %v382 = vpop.f32.mrb[0].mxu0
    %383 = vdwg.mxu0
    %v384 = vmul.f32 %v145, %v145
    %v385 = vmul.f32 %v150, %v150
    %v386 = vmul.f32 %v155, %v155
    %v387 = vmul.f32 %v160, %v160
    %v388 = vmul.f32 %v165, %v165
    %v389 = vmul.f32 %v170, %v170
    %v390 = vmul.f32 %v175, %v175
    %v391 = vmul.f32 %v180, %v180
    %v392 = vmul.f32 %v185, %v185
    %v393 = vmul.f32 %v190, %v190
    %v394 = vmul.f32 %v195, %v195
    %v395 = vmul.f32 %v200, %v200
    %v396 = vmul.f32 %v205, %v205
    %v397 = vmul.f32 %v210, %v210
    %v398 = vmul.f32 %v215, %v215
    %v399 = vmul.f32 %v220, %v220
    %v400 = vsub.f32 %v306, %v384
    %v401 = vsub.f32 %v311, %v385
    %v402 = vsub.f32 %v316, %v386
    %v403 = vsub.f32 %v321, %v387
    %v404 = vsub.f32 %v326, %v388
    %v405 = vsub.f32 %v331, %v389
    %v406 = vsub.f32 %v336, %v390
    %v407 = vsub.f32 %v341, %v391
    %v408 = vsub.f32 %v346, %v392
    %v409 = vsub.f32 %v351, %v393
    %v410 = vsub.f32 %v356, %v394
    %v411 = vsub.f32 %v361, %v395
    %v412 = vsub.f32 %v366, %v396
    %v413 = vsub.f32 %v371, %v397
    %v414 = vsub.f32 %v376, %v398
    %v415 = vsub.f32 %v381, %v399
    %v416 = vsub.f32 %v46, %v145
    %v417 = vsub.f32 %v47, %v150
    %v418 = vsub.f32 %v48, %v155
    %v419 = vsub.f32 %v49, %v160
    %v420 = vsub.f32 %v50, %v165
    %v421 = vsub.f32 %v51, %v170
    %v422 = vsub.f32 %v52, %v175
    %v423 = vsub.f32 %v53, %v180
    %v424 = vsub.f32 %v54, %v185
    %v425 = vsub.f32 %v55, %v190
    %v426 = vsub.f32 %v56, %v195
    %v427 = vsub.f32 %v57, %v200
    %v428 = vsub.f32 %v58, %v205
    %v429 = vsub.f32 %v59, %v210
    %v430 = vsub.f32 %v60, %v215
    %v431 = vsub.f32 %v61, %v220
    %v432 = vadd.f32 %v400, 1e-05
    %v433 = vadd.f32 %v401, 1e-05
    %v434 = vadd.f32 %v402, 1e-05
    %v435 = vadd.f32 %v403, 1e-05
    %v436 = vadd.f32 %v404, 1e-05
    %v437 = vadd.f32 %v405, 1e-05
    %v438 = vadd.f32 %v406, 1e-05
    %v439 = vadd.f32 %v407, 1e-05
    %v440 = vadd.f32 %v408, 1e-05
    %v441 = vadd.f32 %v409, 1e-05
    %v442 = vadd.f32 %v410, 1e-05
    %v443 = vadd.f32 %v411, 1e-05
    %v444 = vadd.f32 %v412, 1e-05
    %v445 = vadd.f32 %v413, 1e-05
    %v446 = vadd.f32 %v414, 1e-05
    %v447 = vadd.f32 %v415, 1e-05
    %v448 = vrsqrt.pop %v432
    %v449 = vrsqrt.pop %v433
    %v450 = vrsqrt.pop %v434
    %v451 = vrsqrt.pop %v435
    %v452 = vrsqrt.pop %v436
    %v453 = vrsqrt.pop %v437
    %v454 = vrsqrt.pop %v438
    %v455 = vrsqrt.pop %v439
    %v456 = vrsqrt.pop %v440
    %v457 = vrsqrt.pop %v441
    %v458 = vrsqrt.pop %v442
    %v459 = vrsqrt.pop %v443
    %v460 = vrsqrt.pop %v444
    %v461 = vrsqrt.pop %v445
    %v462 = vrsqrt.pop %v446
    %v463 = vrsqrt.pop %v447
    %v464 = vmul.f32 %v416, %v448
    %v465 = vmul.f32 %v417, %v449
    %v466 = vmul.f32 %v418, %v450
    %v467 = vmul.f32 %v419, %v451
    %v468 = vmul.f32 %v420, %v452
    %v469 = vmul.f32 %v421, %v453
    %v470 = vmul.f32 %v422, %v454
    %v471 = vmul.f32 %v423, %v455
    %v472 = vmul.f32 %v424, %v456
    %v473 = vmul.f32 %v425, %v457
    %v474 = vmul.f32 %v426, %v458
    %v475 = vmul.f32 %v427, %v459
    %v476 = vmul.f32 %v428, %v460
    %v477 = vmul.f32 %v429, %v461
    %v478 = vmul.f32 %v430, %v462
    %v479 = vmul.f32 %v431, %v463
    %v480 = vld [vmem:[%s1] sm:$0x1]
    %v482 = vlaneseq
    %v483 = vshrl.u32 %v482, 7
    %v484 = vsub.s32 0, %v483
    %v485 = vrot.slane %v480, %v484
    %v487 = vmul.f32 %v464, %v485
    %v488 = vmul.f32 %v465, %v485
    %v489 = vmul.f32 %v466, %v485
    %v490 = vmul.f32 %v467, %v485
    %v491 = vmul.f32 %v468, %v485
    %v492 = vmul.f32 %v469, %v485
    %v493 = vmul.f32 %v470, %v485
    %v494 = vmul.f32 %v471, %v485
    %v495 = vmul.f32 %v472, %v485
    %v496 = vmul.f32 %v473, %v485
    %v497 = vmul.f32 %v474, %v485
    %v498 = vmul.f32 %v475, %v485
    %v499 = vmul.f32 %v476, %v485
    %v500 = vmul.f32 %v477, %v485
    %v501 = vmul.f32 %v478, %v485
    %v502 = vmul.f32 %v479, %v485
    %v503 = vld [vmem:[%s2] sm:$0x1]
    %v505 = vlaneseq
    %v506 = vshrl.u32 %v505, 7
    %v507 = vsub.s32 0, %v506
    %v508 = vrot.slane %v503, %v507
    %v510 = vadd.f32 %v487, %v508
    %v511 = vadd.f32 %v488, %v508
    %v512 = vadd.f32 %v489, %v508
    %v513 = vadd.f32 %v490, %v508
    %v514 = vadd.f32 %v491, %v508
    %v515 = vadd.f32 %v492, %v508
    %v516 = vadd.f32 %v493, %v508
    %v517 = vadd.f32 %v494, %v508
    %v518 = vadd.f32 %v495, %v508
    %v519 = vadd.f32 %v496, %v508
    %v520 = vadd.f32 %v497, %v508
    %v521 = vadd.f32 %v498, %v508
    %v522 = vadd.f32 %v499, %v508
    %v523 = vadd.f32 %v500, %v508
    %v524 = vadd.f32 %v501, %v508
    %v525 = vadd.f32 %v502, %v508
    %526 = vst [vmem:[#allocation7] sm:$0xff] %v510
    %527 = vst [vmem:[#allocation7 + $0x8] sm:$0xff] %v511
    %528 = vst [vmem:[#allocation7 + $0x10] sm:$0xff] %v512
    %529 = vst [vmem:[#allocation7 + $0x18] sm:$0xff] %v513
    %530 = vst [vmem:[#allocation7 + $0x20] sm:$0xff] %v514
    %531 = vst [vmem:[#allocation7 + $0x28] sm:$0xff] %v515
    %532 = vst [vmem:[#allocation7 + $0x30] sm:$0xff] %v516
    %533 = vst [vmem:[#allocation7 + $0x38] sm:$0xff] %v517
    %534 = vst [vmem:[#allocation7 + $0x40] sm:$0xff] %v518
    %535 = vst [vmem:[#allocation7 + $0x48] sm:$0xff] %v519
    %536 = vst [vmem:[#allocation7 + $0x50] sm:$0xff] %v520
    %537 = vst [vmem:[#allocation7 + $0x58] sm:$0xff] %v521
    %538 = vst [vmem:[#allocation7 + $0x60] sm:$0xff] %v522
    %539 = vst [vmem:[#allocation7 + $0x68] sm:$0xff] %v523
    %540 = vst [vmem:[#allocation7 + $0x70] sm:$0xff] %v524
    %541 = vst [vmem:[#allocation7 + $0x78] sm:$0xff] %v525
    // Predicated region
    $region26: #{tpu_custom_call.1} parent=1 // pred_check
      _
    $region27: #{tpu_custom_call.1} parent=1 // pred_check_branch
      %543 = sbr.rel (0) target = $region29
    $region28: #{tpu_custom_call.1} parent=1 // pred_region
      %s545 = ssub.s32 2048, 2048
      %546 = vsyncadd [#allocation4], %s545
      %s547 = sshll.u32 [#allocation7], 4
      %s548 = int_to_ptr.vmem [resolvable:$true] %s547
      %553 = dma.vmem_to_hbm [thread:$0]  %s548, 2048, %s4, [#allocation4], 128, 128, 8
    $region29: #{tpu_custom_call.1} parent=1 // pred_fallthru
      _
    // Predicated region
    $region30: #{tpu_custom_call.1} parent=1 // pred_check
      _
    $region31: #{tpu_custom_call.1} parent=1 // pred_check_branch
      %555 = sbr.rel (0) target = $region33
    $region32: #{tpu_custom_call.1} parent=1 // pred_region
      %556 = dma.done [#allocation4], 2048
    $region33: #{tpu_custom_call.1} parent=1 // pred_fallthru
      _
    %557 = vsyncpa [#allocation3], 1
    %558 = vsyncpa [#allocation6], 1
    %559 = vsyncpa [#allocation4], 1

</llo_original>
